<compile_context>
chip_gen: v7x
topology: tpu7x:2x2x1
jax: 0.10.0
libtpu: 0.0.40
codegen_flags: <defaults>
</compile_context>

<pallas_src>
import numpy as np

import jax
import jax.numpy as jnp
from jax.experimental import pallas as pl
from jax.experimental.pallas import tpu as pltpu

_LANE = 128
_SUBLANE = 8
_SMALL_FUSE_ELEMS = 1 << 18   # adj element count below which we fuse the batch
_SMALL_FUSE_MAX_B = 8         # keep the tiny-kernel unroll bounded


def _round_up(v, m):
    return (v + m - 1) // m * m


def _cdiv(a, b):
    return -(-a // b)


def _vmem_budget_bytes():
    """Generation-aware per-core VMEM budget with ~15% headroom."""
    try:
        info = pltpu.get_tpu_info()
        cap = int(getattr(info, "vmem_capacity_bytes", 0) or 0)
        if cap > 0:
            return int(cap * 0.85)          # ~54 MiB on v7x, ~108 MiB on v5e/v6e
    except Exception:
        pass
    return 56 << 20                         # safe fallback on every generation


# ---------------------------------------------------------------------------
# Kernels
# ---------------------------------------------------------------------------
def _gcn_small_kernel(adj_ref, x_ref, wT_ref, b_ref, out_ref):
    """Tiny problems: whole batch in one step, plain per-batch 2-D MXU dots."""
    w = wT_ref[...]
    bias = b_ref[...]
    for b in range(adj_ref.shape[0]):                   # B <= 8, unrolled
        ax = jnp.dot(adj_ref[b], x_ref[b], preferred_element_type=jnp.float32)
        o = jnp.dot(ax.astype(w.dtype), w, preferred_element_type=jnp.float32)
        out_ref[b] = (o + bias).astype(out_ref.dtype)


def _gcn_rowtile_kernel(adj_ref, x_ref, wT_ref, b_ref, out_ref):
    """out_tile = (adj_tile @ x) @ W.T + b ; x and W.T are VMEM resident."""
    ax = jnp.dot(adj_ref[0], x_ref[0], preferred_element_type=jnp.float32)
    o = jnp.dot(ax.astype(wT_ref.dtype), wT_ref[...],
                preferred_element_type=jnp.float32)
    out_ref[0] = (o + b_ref[...]).astype(out_ref.dtype)


def _gcn_adj_h_kernel(adj_ref, h_ref, b_ref, out_ref):
    """out_tile = adj_tile @ h + b ; h = x @ W.T precomputed, VMEM resident."""
    o = jnp.dot(adj_ref[0], h_ref[0], preferred_element_type=jnp.float32)
    out_ref[0] = (o + b_ref[...]).astype(out_ref.dtype)


# ---------------------------------------------------------------------------
# Wrapper
# ---------------------------------------------------------------------------
def gcn_conv(x, adj, weights, bias=None, *, compute_dtype=None,
             max_rows_per_tile=None):
    """x: [B,N,Cin], adj: [B,N,N], weights: [Cout,Cin], bias: [Cout] -> [B,N,Cout].

    compute_dtype: optional dtype (e.g. jnp.bfloat16) for the streamed
    operands / MXU inputs (accumulation stays f32, output keeps x.dtype).
    This is a caller-visible accuracy trade; leave None for exact module
    semantics.  adj/x stream in their stored dtype when compute_dtype is None
    (no extra HBM cast pass).  max_rows_per_tile optionally caps the row-tile
    size (mainly for testing).
    """
    B, N, Cin = x.shape
    Cout, Cin_w = weights.shape
    assert Cin_w == Cin, "weight / input channel mismatch"
    assert adj.shape == (B, N, N), "adjacency shape mismatch"

    out_dtype = x.dtype

    # Only cast when the caller explicitly asks for a different compute dtype
    # and the operand is not already stored in it.
    if compute_dtype is not None:
        cdt = np.dtype(compute_dtype)
        adj_c = adj if adj.dtype == cdt else adj.astype(cdt)
        x_c = x if x.dtype == cdt else x.astype(cdt)
        w_dtype = cdt
    else:
        adj_c = adj
        x_c = x
        w_dtype = np.dtype(x.dtype)

    # Lane-dense output channels: pad Cout to a multiple of 128 (padded W /
    # bias are tiny & VMEM resident); slice back only if actually padded.
    Cout_p = _round_up(Cout, _LANE)
    wT = weights.T.astype(w_dtype)
    if Cout_p != Cout:
        wT = jnp.pad(wT, ((0, 0), (0, Cout_p - Cout)))
    if bias is None:
        b2 = jnp.zeros((1, Cout_p), jnp.float32)
    else:
        b2 = jnp.pad(bias.astype(jnp.float32),
                     (0, Cout_p - Cout)).reshape(1, Cout_p)

    # ---- tiny problems: fuse the whole batch into a single grid step -------
    if B * N * N <= _SMALL_FUSE_ELEMS and B <= _SMALL_FUSE_MAX_B:
        out_p = pl.pallas_call(
            _gcn_small_kernel,
            out_shape=jax.ShapeDtypeStruct((B, N, Cout_p), out_dtype),
            grid_spec=pltpu.PrefetchScalarGridSpec(
                num_scalar_prefetch=0,
                grid=(1,),
                in_specs=[
                    pl.BlockSpec((B, N, N), lambda i: (0, 0, 0)),
                    pl.BlockSpec((B, N, Cin), lambda i: (0, 0, 0)),
                    pl.BlockSpec((Cin, Cout_p), lambda i: (0, 0)),
                    pl.BlockSpec((1, Cout_p), lambda i: (0, 0)),
                ],
                out_specs=pl.BlockSpec((B, N, Cout_p), lambda i: (0, 0, 0)),
            ),
            compiler_params=pltpu.CompilerParams(
                dimension_semantics=("arbitrary",)),
        )(adj_c, x_c, wT, b2)
        return out_p if Cout_p == Cout else out_p[..., :Cout]

    # ---- large problems: row-tile the adjacency ------------------------------
    # Association: precompute h = x @ W.T whenever it does not enlarge the
    # VMEM-resident operand (removes the second dot / cast from the hot loop).
    Cin_p = _round_up(Cin, _LANE)
    use_h = Cout_p <= Cin_p

    adj_item = np.dtype(adj_c.dtype).itemsize
    out_item = np.dtype(out_dtype).itemsize
    res_item = np.dtype(w_dtype).itemsize

    if use_h:
        h = jnp.einsum("bnc,co->bno", x_c, wT,
                       preferred_element_type=jnp.float32).astype(w_dtype)
        resident = h
        res_bytes_per_batch = N * Cout_p * res_item
        inner_cols = Cout_p
        kernel = _gcn_adj_h_kernel
    else:
        resident = x_c
        res_bytes_per_batch = (N * Cin * np.dtype(x_c.dtype).itemsize
                               + Cin * Cout_p * res_item)
        inner_cols = max(Cin_p, Cout_p)
        kernel = _gcn_rowtile_kernel

    single_buf = hasattr(pl, "Buffered")      # single-buffer resident operands
    vmem_cap = _vmem_budget_bytes()
    res_bufs = 1 if single_buf else 2

    # Rows per adjacency tile: bytes-based, derived from the VMEM budget.
    if N < _SUBLANE:
        tm = N                                # full-extent row block
    else:
        fixed = res_bufs * res_bytes_per_batch + 2 * Cout_p * 4 + (2 << 20)
        per_row = (2 * N * adj_item           # adj tile, double-buffered
                   + 2 * Cout_p * out_item    # out tile, double-buffered
                   + 4 * (inner_cols + Cout_p))   # f32 intermediates
        budget = vmem_cap - fixed
        tm = budget // per_row if budget > per_row * _SUBLANE else _SUBLANE
        tm = min(tm, (16 << 20) // max(1, N * adj_item))   # adj tile <= 16 MiB
        tm = min(tm, 1024)
        if max_rows_per_tile is not None:
            tm = min(tm, max(max_rows_per_tile, _SUBLANE))
        N8 = _round_up(N, _SUBLANE)
        tm = max(_SUBLANE, min((tm // _SUBLANE) * _SUBLANE, N8))
        # Balance row tiles so the last one has minimal out-of-bounds rows.
        n_tiles = _cdiv(N8, tm)
        tm = min(_round_up(_cdiv(N8, n_tiles), _SUBLANE), N8)

    T = _cdiv(N, tm)          # row tiles per batch (last one may be partial)
    grid_len = B * T

    def _idx_adj(i):
        return (i // T, i % T, 0)

    def _idx_res(i):
        return (i // T, 0, 0)

    def _idx_const2(i):
        return (0, 0)

    def _idx_out(i):
        return (i // T, i % T, 0)

    est = (res_bufs * res_bytes_per_batch
           + 2 * tm * N * adj_item
           + 2 * tm * Cout_p * out_item
           + 4 * tm * (inner_cols + Cout_p)
           + 2 * Cout_p * 4
           + (2 << 20))
    vmem_limit = int(min(vmem_cap, max(est, 16 << 20)))

    flops = 2 * B * N * N * (Cout_p if use_h else Cin)
    if not use_h:
        flops += 2 * B * N * Cin * Cout_p
    bytes_accessed = (B * N * N * adj_item
                      + B * res_bytes_per_batch
                      + B * N * Cout_p * out_item)
    cost = pl.CostEstimate(flops=int(flops), transcendentals=0,
                           bytes_accessed=int(bytes_accessed))

    def _build_and_run(use_single_buffer, limit):
        if use_single_buffer:
            def res_spec(shape, imap):
                return pl.BlockSpec(shape, imap, pipeline_mode=pl.Buffered(1))
        else:
            def res_spec(shape, imap):
                return pl.BlockSpec(shape, imap)

        if use_h:
            in_specs = [
                pl.BlockSpec((1, tm, N), _idx_adj),          # adj row tile
                res_spec((1, N, Cout_p), _idx_res),          # h resident
                res_spec((1, Cout_p), _idx_const2),          # bias resident
            ]
            operands = (adj_c, resident, b2)
        else:
            in_specs = [
                pl.BlockSpec((1, tm, N), _idx_adj),          # adj row tile
                res_spec((1, N, Cin), _idx_res),             # x resident
                res_spec((Cin, Cout_p), _idx_const2),        # W.T resident
                res_spec((1, Cout_p), _idx_const2),          # bias resident
            ]
            operands = (adj_c, resident, wT, b2)

        call = pl.pallas_call(
            kernel,
            out_shape=jax.ShapeDtypeStruct((B, N, Cout_p), out_dtype),
            grid_spec=pltpu.PrefetchScalarGridSpec(
                num_scalar_prefetch=0,
                grid=(grid_len,),
                in_specs=in_specs,
                out_specs=pl.BlockSpec((1, tm, Cout_p), _idx_out),
            ),
            compiler_params=pltpu.CompilerParams(
                dimension_semantics=("parallel",),
                vmem_limit_bytes=limit,
            ),
            cost_estimate=cost,
        )
        return call(*operands)

    try:
        out_p = _build_and_run(single_buf, vmem_limit)
    except Exception:
        if not single_buf:
            raise
        # Fall back to default double-buffering if Buffered(1) is rejected.
        out_p = _build_and_run(False, int(vmem_cap))

    return out_p if Cout_p == Cout else out_p[..., :Cout]


def _reference(x, adj, weights, bias):
    return jnp.matmul(jnp.matmul(adj, x), weights.T) + bias


if __name__ == "__main__":
    def _make(key, B, N, Cin, Cout):
        k = jax.random.split(key, 4)
        x = jax.random.normal(k[0], (B, N, Cin), jnp.float32)
        adj = jax.random.normal(k[1], (B, N, N), jnp.float32)
        w = jax.random.normal(k[2], (Cout, Cin), jnp.float32) * 0.1
        b = jax.random.normal(k[3], (Cout,), jnp.float32) * 0.1
        return x, adj, w, b

    root = jax.random.PRNGKey(0)
    keys = jax.random.split(root, 4)

    # 1) module-sized tiny shapes -> fused single-step path
    x1, adj1, w1, b1 = _make(keys[0], 2, 16, 8, 32)
    out1 = jax.block_until_ready(gcn_conv(x1, adj1, w1, b1))
    ref1 = _reference(x1, adj1, w1, b1)
    assert out1.shape == (2, 16, 32)
    assert jnp.allclose(out1, ref1, atol=2e-4, rtol=2e-4), "tiny path mismatch"

    # 2) row-tiled, precomputed-h association (Cout_p <= Cin_p)
    x2, adj2, w2, b2 = _make(keys[1], 2, 384, 64, 32)
    out2 = jax.block_until_ready(gcn_conv(x2, adj2, w2, b2))
    ref2 = _reference(x2, adj2, w2, b2)
    assert out2.shape == (2, 384, 32)
    assert jnp.allclose(out2, ref2, atol=1e-2, rtol=2e-3), "adj@h path mismatch"

    # 3) row-tiled, fused (adj@x)@W.T association (Cout_p > Cin_p)
    x3, adj3, w3, b3 = _make(keys[2], 2, 384, 32, 192)
    out3 = jax.block_until_ready(gcn_conv(x3, adj3, w3, b3))
    ref3 = _reference(x3, adj3, w3, b3)
    assert out3.shape == (2, 384, 192)
    assert jnp.allclose(out3, ref3, atol=1e-2, rtol=2e-3), "row-tile path mismatch"

    # 4) multi-row-tile grid with a partial (boundary-masked) last tile,
    #    N not a multiple of 128, flattened parallel grid over B * tiles
    x4, adj4, w4, b4 = _make(keys[3], 4, 304, 96, 48)
    out4 = jax.block_until_ready(
        gcn_conv(x4, adj4, w4, b4, max_rows_per_tile=128))
    ref4 = _reference(x4, adj4, w4, b4)
    assert out4.shape == (4, 304, 48)
    rel4 = jnp.linalg.norm(out4 - ref4) / jnp.linalg.norm(ref4)
    assert rel4 < 1e-2, f"partial-tile relative error too large: {rel4}"
    assert jnp.allclose(out4, ref4, atol=5e-2, rtol=5e-3), "partial-tile mismatch"

    # 5) bf16 streaming dtype (halved adj HBM bytes), f32 accumulation
    out5 = jax.block_until_ready(
        gcn_conv(x2, adj2, w2, b2, compute_dtype=jnp.bfloat16))
    rel5 = jnp.linalg.norm(out5 - ref2) / jnp.linalg.norm(ref2)
    assert out5.shape == (2, 384, 32)
    assert rel5 < 5e-2, f"bf16 relative error too large: {rel5}"

    print("KERNEL_OK")
</pallas_src>

<mosaic_0001>
module attributes {stable_mosaic.version = 11 : i64} {
  func.func @_gcn_small_kernel(%arg0: i32, %arg1: memref<2x16x16xf32, #tpu.memory_space<vmem>>, %arg2: memref<2x16x8xf32, #tpu.memory_space<vmem>>, %arg3: memref<8x128xf32, #tpu.memory_space<vmem>>, %arg4: memref<1x128xf32, #tpu.memory_space<vmem>>, %arg5: memref<2x16x128xf32, #tpu.memory_space<vmem>>) attributes {dimension_semantics = [#tpu.dimension_semantics<arbitrary>], iteration_bounds = array<i64: 1>, scalar_prefetch = 0 : i64, scratch_operands = 0 : i64, tpu.core_type = #tpu.core_type<tc>, window_params = [{pipeline_mode = #tpu.pipeline_mode<synchronous>, transform_indices = @transform_0, window_bounds = array<i64: 2, 16, 16>}, {pipeline_mode = #tpu.pipeline_mode<synchronous>, transform_indices = @transform_1, window_bounds = array<i64: 2, 16, 8>}, {pipeline_mode = #tpu.pipeline_mode<synchronous>, transform_indices = @transform_2, window_bounds = array<i64: 8, 128>}, {pipeline_mode = #tpu.pipeline_mode<synchronous>, transform_indices = @transform_3, window_bounds = array<i64: 1, 128>}, {pipeline_mode = #tpu.pipeline_mode<synchronous>, transform_indices = @transform_4, window_bounds = array<i64: 2, 16, 128>}]} {
    %c0 = arith.constant 0 : index
    %c0_0 = arith.constant 0 : index
    %0 = vector.load %arg3[%c0, %c0_0] : memref<8x128xf32, #tpu.memory_space<vmem>>, vector<8x128xf32>
    %c0_1 = arith.constant 0 : index
    %c0_2 = arith.constant 0 : index
    %1 = vector.load %arg4[%c0_1, %c0_2] : memref<1x128xf32, #tpu.memory_space<vmem>>, vector<1x128xf32>
    %c0_3 = arith.constant 0 : index
    %c0_4 = arith.constant 0 : index
    %c0_5 = arith.constant 0 : index
    %2 = vector.load %arg1[%c0_3, %c0_4, %c0_5] : memref<2x16x16xf32, #tpu.memory_space<vmem>>, vector<1x16x16xf32>
    %3 = vector.shape_cast %2 : vector<1x16x16xf32> to vector<16x16xf32>
    %c0_6 = arith.constant 0 : index
    %c0_7 = arith.constant 0 : index
    %c0_8 = arith.constant 0 : index
    %4 = vector.load %arg2[%c0_6, %c0_7, %c0_8] : memref<2x16x8xf32, #tpu.memory_space<vmem>>, vector<1x16x8xf32>
    %5 = vector.shape_cast %4 : vector<1x16x8xf32> to vector<16x8xf32>
    %cst = arith.constant dense<0.000000e+00> : vector<16x8xf32>
    %6 = tpu.matmul %3, %5, %cst {dimension_numbers = #tpu.dot_dimension_numbers<[1], [0], [0], [1], [0, 0, 1, 1], [], []>} : vector<16x16xf32>, vector<16x8xf32>, vector<16x8xf32> -> vector<16x8xf32>
    %cst_9 = arith.constant dense<0.000000e+00> : vector<16x128xf32>
    %7 = tpu.matmul %6, %0, %cst_9 {dimension_numbers = #tpu.dot_dimension_numbers<[1], [0], [0], [1], [0, 0, 1, 1], [], []>} : vector<16x8xf32>, vector<8x128xf32>, vector<16x128xf32> -> vector<16x128xf32>
    %8 = vector.broadcast %1 : vector<1x128xf32> to vector<16x128xf32>
    %9 = arith.addf %7, %8 : vector<16x128xf32>
    %c0_10 = arith.constant 0 : index
    %c0_11 = arith.constant 0 : index
    %c0_12 = arith.constant 0 : index
    %10 = vector.load %arg5[%c0_10, %c0_11, %c0_12] : memref<2x16x128xf32, #tpu.memory_space<vmem>>, vector<1x16x128xf32>
    %11 = vector.shape_cast %10 : vector<1x16x128xf32> to vector<16x128xf32>
    %12 = vector.shape_cast %9 : vector<16x128xf32> to vector<1x16x128xf32>
    tpu.vector_store %arg5[%c0_10, %c0_11, %c0_12], %12 {strides = array<i32>} : memref<2x16x128xf32, #tpu.memory_space<vmem>>, vector<1x16x128xf32>,
    %c1 = arith.constant 1 : index
    %c0_13 = arith.constant 0 : index
    %c0_14 = arith.constant 0 : index
    %13 = vector.load %arg1[%c1, %c0_13, %c0_14] : memref<2x16x16xf32, #tpu.memory_space<vmem>>, vector<1x16x16xf32>
    %14 = vector.shape_cast %13 : vector<1x16x16xf32> to vector<16x16xf32>
    %c1_15 = arith.constant 1 : index
    %c0_16 = arith.constant 0 : index
    %c0_17 = arith.constant 0 : index
    %15 = vector.load %arg2[%c1_15, %c0_16, %c0_17] : memref<2x16x8xf32, #tpu.memory_space<vmem>>, vector<1x16x8xf32>
    %16 = vector.shape_cast %15 : vector<1x16x8xf32> to vector<16x8xf32>
    %cst_18 = arith.constant dense<0.000000e+00> : vector<16x8xf32>
    %17 = tpu.matmul %14, %16, %cst_18 {dimension_numbers = #tpu.dot_dimension_numbers<[1], [0], [0], [1], [0, 0, 1, 1], [], []>} : vector<16x16xf32>, vector<16x8xf32>, vector<16x8xf32> -> vector<16x8xf32>
    %cst_19 = arith.constant dense<0.000000e+00> : vector<16x128xf32>
    %18 = tpu.matmul %17, %0, %cst_19 {dimension_numbers = #tpu.dot_dimension_numbers<[1], [0], [0], [1], [0, 0, 1, 1], [], []>} : vector<16x8xf32>, vector<8x128xf32>, vector<16x128xf32> -> vector<16x128xf32>
    %19 = vector.broadcast %1 : vector<1x128xf32> to vector<16x128xf32>
    %20 = arith.addf %18, %19 : vector<16x128xf32>
    %c1_20 = arith.constant 1 : index
    %c0_21 = arith.constant 0 : index
    %c0_22 = arith.constant 0 : index
    %21 = vector.load %arg5[%c1_20, %c0_21, %c0_22] : memref<2x16x128xf32, #tpu.memory_space<vmem>>, vector<1x16x128xf32>
    %22 = vector.shape_cast %21 : vector<1x16x128xf32> to vector<16x128xf32>
    %23 = vector.shape_cast %20 : vector<16x128xf32> to vector<1x16x128xf32>
    tpu.vector_store %arg5[%c1_20, %c0_21, %c0_22], %23 {strides = array<i32>} : memref<2x16x128xf32, #tpu.memory_space<vmem>>, vector<1x16x128xf32>,
    return
  }
  func.func @transform_0(%arg0: i32) -> (i32, i32, i32) {
    %c0_i32 = arith.constant 0 : i32
    %c0_i32_0 = arith.constant 0 : i32
    %c0_i32_1 = arith.constant 0 : i32
    %c0_i32_2 = arith.constant 0 : i32
    return %c0_i32, %c0_i32_0, %c0_i32_1 : i32, i32, i32
  }
  func.func @transform_1(%arg0: i32) -> (i32, i32, i32) {
    %c0_i32 = arith.constant 0 : i32
    %c0_i32_0 = arith.constant 0 : i32
    %c0_i32_1 = arith.constant 0 : i32
    %c0_i32_2 = arith.constant 0 : i32
    return %c0_i32, %c0_i32_0, %c0_i32_1 : i32, i32, i32
  }
  func.func @transform_2(%arg0: i32) -> (i32, i32) {
    %c0_i32 = arith.constant 0 : i32
    %c0_i32_0 = arith.constant 0 : i32
    %c0_i32_1 = arith.constant 0 : i32
    return %c0_i32, %c0_i32_0 : i32, i32
  }
  func.func @transform_3(%arg0: i32) -> (i32, i32) {
    %c0_i32 = arith.constant 0 : i32
    %c0_i32_0 = arith.constant 0 : i32
    %c0_i32_1 = arith.constant 0 : i32
    return %c0_i32, %c0_i32_0 : i32, i32
  }
  func.func @transform_4(%arg0: i32) -> (i32, i32, i32) {
    %c0_i32 = arith.constant 0 : i32
    %c0_i32_0 = arith.constant 0 : i32
    %c0_i32_1 = arith.constant 0 : i32
    %c0_i32_2 = arith.constant 0 : i32
    return %c0_i32, %c0_i32_0, %c0_i32_1 : i32, i32, i32
  }
}

</mosaic_0001>

<llo_original>
// kernel: tpu_custom_call.1
$region0: #{tpu_custom_call.1}
  #allocation0 [shape = 'u32[]', space=smem, size = 0x4, offset = 0x4, fixed_abs, tag = 'smem constant byte address 0x4 - core index']
  #allocation1 [shape = 'u32[144,128]{1,0:T(1,128)}', space=vmem, size = 0x12000, scoped, tag = 'internal scratch']
  %s0 = inlined_call_operand.vmem [shape: f32[2,16,16], index: 0, kind: input, shape index: {}]
  %s1 = inlined_call_operand.vmem [shape: f32[2,16,8], index: 1, kind: input, shape index: {}]
  %s2 = inlined_call_operand.vmem [shape: f32[8,128], index: 2, kind: input, shape index: {}]
  %s3 = inlined_call_operand.vmem [shape: f32[1,128], index: 3, kind: input, shape index: {}]
  %s4 = inlined_call_operand.hbm [shape: f32[2,16,128], index: 4, kind: output, shape index: {}]
  %s5 = sld [smem:[#allocation0]]
  $region26: #{tpu_custom_call.1} parent=0
    _
  %s7 = ssub.s32 1, %s5
  %s8 = scalar_select 0, %s7, %s5
  $region1: #{tpu_custom_call.1} parent=0
    #allocation2 [shape = 'u8[16384]{0}', space=vmem, size = 0x4000, scoped, tag = 'output window, operand 0, single buffered']
    #allocation3 [shape = 's32[1]{0}', space=sflag, size = 0x4, scoped, tag = 'scoped memory for tpu_custom_call.1']
    %9 = vsyncpa [#allocation3], 0
    // Predicated region
    $region2: #{tpu_custom_call.1} parent=1 // pred_check
      _
    $region3: #{tpu_custom_call.1} parent=1 // pred_check_branch
      %11 = sbr.rel (0) target = $region5
    $region4: #{tpu_custom_call.1} parent=1 // pred_region
      _
    $region5: #{tpu_custom_call.1} parent=1 // pred_fallthru
      _
    // Predicated region
    $region6: #{tpu_custom_call.1} parent=1 // pred_check
      _
    $region7: #{tpu_custom_call.1} parent=1 // pred_check_branch
      %13 = sbr.rel (0) target = $region9
    $region8: #{tpu_custom_call.1} parent=1 // pred_region
      _
    $region9: #{tpu_custom_call.1} parent=1 // pred_fallthru
      _
    // Predicated region
    $region10: #{tpu_custom_call.1} parent=1 // pred_check
      _
    $region11: #{tpu_custom_call.1} parent=1 // pred_check_branch
      %15 = sbr.rel (0) target = $region13
    $region12: #{tpu_custom_call.1} parent=1 // pred_region
      _
    $region13: #{tpu_custom_call.1} parent=1 // pred_fallthru
      _
    // Predicated region
    $region14: #{tpu_custom_call.1} parent=1 // pred_check
      _
    $region15: #{tpu_custom_call.1} parent=1 // pred_check_branch
      %17 = sbr.rel (0) target = $region17
    $region16: #{tpu_custom_call.1} parent=1 // pred_region
      _
    $region17: #{tpu_custom_call.1} parent=1 // pred_fallthru
      _
    %v18 = vld [vmem:[%s2] sm:$0xff]
    %v19 = vld [vmem:[%s3] sm:$0x1]
    %v20 = vld [vmem:[%s0] sm:$0xff]
    %v21 = vld [vmem:[%s0 + $0x8] sm:$0xff]
    %v22 = vld [vmem:[%s1] sm:$0xff]
    %v23 = vld [vmem:[%s1 + $0x8] sm:$0xff]
    %vm24 = vcmask 130048
    %v26 = vsel %vm24, %v20, 0
    %v29 = vsel %vm24, %v21, 0
    %31 = vmatprep.subr.mxu0 0.0
    %32 = vmatpush1.msra.mxu0 %v22
    %33 = vmatprep.subr.mxu0 0.0
    %34 = vmatpush1.msra.mxu0 %v23
    %35 = vmatprep.subr.mxu0 0.0
    %36 = vmatpush1.msra.mxu0 0.0
    %37 = vmatprep.subr.mxu0 0.0
    %38 = vmatpush1.msra.mxu0 0.0
    %39 = vmatprep.subr.mxu0 0.0
    %40 = vmatpush1.msra.mxu0 0.0
    %41 = vmatprep.subr.mxu0 0.0
    %42 = vmatpush1.msra.mxu0 0.0
    %43 = vmatprep.subr.mxu0 0.0
    %44 = vmatpush1.msra.mxu0 0.0
    %45 = vmatprep.subr.mxu0 0.0
    %46 = vmatpush1.msra.mxu0 0.0
    %47 = vmatprep.subr.mxu0 0.0
    %48 = vmatpush1.msra.mxu0 0.0
    %49 = vmatprep.subr.mxu0 0.0
    %50 = vmatpush1.msra.mxu0 0.0
    %51 = vmatprep.subr.mxu0 0.0
    %52 = vmatpush1.msra.mxu0 0.0
    %53 = vmatprep.subr.mxu0 0.0
    %54 = vmatpush1.msra.mxu0 0.0
    %55 = vmatprep.subr.mxu0 0.0
    %56 = vmatpush1.msra.mxu0 0.0
    %57 = vmatprep.subr.mxu0 0.0
    %58 = vmatpush1.msra.mxu0 0.0
    %59 = vmatprep.subr.mxu0 0.0
    %60 = vmatpush1.msra.mxu0 0.0
    %61 = vmatprep.subr.mxu0 0.0
    %62 = vmatpush1.msra.mxu0 0.0
    %63 = vmatprep.subr.mxu0 0.0
    %64 = vmatpush1.msra.mxu0 0.0
    %65 = vmatprep.subr.mxu0 0.0
    %66 = vmatpush1.msra.mxu0 0.0
    %67 = vmatprep.subr.mxu0 0.0
    %68 = vmatpush1.msra.mxu0 0.0
    %69 = vmatprep.subr.mxu0 0.0
    %70 = vmatpush1.msra.mxu0 0.0
    %71 = vmatprep.subr.mxu0 0.0
    %72 = vmatpush1.msra.mxu0 0.0
    %73 = vmatprep.subr.mxu0 0.0
    %74 = vmatpush1.msra.mxu0 0.0
    %75 = vmatprep.subr.mxu0 0.0
    %76 = vmatpush1.msra.mxu0 0.0
    %77 = vmatprep.subr.mxu0 0.0
    %78 = vmatpush1.msra.mxu0 0.0
    %79 = vmatprep.subr.mxu0 0.0
    %80 = vmatpush1.msra.mxu0 0.0
    %81 = vmatprep.subr.mxu0 0.0
    %82 = vmatpush1.msra.mxu0 0.0
    %83 = vmatprep.subr.mxu0 0.0
    %84 = vmatpush1.msra.mxu0 0.0
    %85 = vmatprep.subr.mxu0 0.0
    %86 = vmatpush1.msra.mxu0 0.0
    %87 = vmatprep.subr.mxu0 0.0
    %88 = vmatpush1.msra.mxu0 0.0
    %89 = vmatprep.subr.mxu0 0.0
    %90 = vmatpush1.msra.mxu0 0.0
    %91 = vmatprep.subr.mxu0 0.0
    %92 = vmatpush1.msra.mxu0 0.0
    %93 = vmatprep.subr.mxu0 0.0
    %94 = vmatpush1.msra.mxu0 0.0
    %95 = vmatprep.mubr.f32.mxu0 0.0
    %96 = vmatmul.mubr.f32.gmra.mrb[0].mxu0 %v26
    %v97 = vpop.f32.mrb[0].mxu0
    %v98 = vadd.f32 0.0, %v97
    %v99 = vpop.f32.mrb[0].mxu0
    %100 = vmatprep.mubr.f32.mxu0 0.0
    %101 = vmatmul.mubr.f32.gmra.mrb[0].mxu0 %v29
    %v102 = vpop.f32.mrb[0].mxu0
    %v103 = vadd.f32 0.0, %v102
    %v104 = vpop.f32.mrb[0].mxu0
    %105 = vdwg.mxu0
    %v107 = vlaneseq
    %v108 = vshrl.u32 %v107, 7
    %v109 = vsub.s32 0, %v108
    %v110 = vrot.slane %v19, %v109
    %vm112 = vcmask 64512
    %v114 = vsel %vm112, %v98, 0
    %v117 = vsel %vm112, %v103, 0
    %119 = vmatprep.subr.mxu0 0.0
    %120 = vmatpush1.msra.mxu0 %v18
    %121 = vmatprep.subr.mxu0 0.0
    %122 = vmatpush1.msra.mxu0 0.0
    %123 = vmatprep.subr.mxu0 0.0
    %124 = vmatpush1.msra.mxu0 0.0
    %125 = vmatprep.subr.mxu0 0.0
    %126 = vmatpush1.msra.mxu0 0.0
    %127 = vmatprep.subr.mxu0 0.0
    %128 = vmatpush1.msra.mxu0 0.0
    %129 = vmatprep.subr.mxu0 0.0
    %130 = vmatpush1.msra.mxu0 0.0
    %131 = vmatprep.subr.mxu0 0.0
    %132 = vmatpush1.msra.mxu0 0.0
    %133 = vmatprep.subr.mxu0 0.0
    %134 = vmatpush1.msra.mxu0 0.0
    %135 = vmatprep.subr.mxu0 0.0
    %136 = vmatpush1.msra.mxu0 0.0
    %137 = vmatprep.subr.mxu0 0.0
    %138 = vmatpush1.msra.mxu0 0.0
    %139 = vmatprep.subr.mxu0 0.0
    %140 = vmatpush1.msra.mxu0 0.0
    %141 = vmatprep.subr.mxu0 0.0
    %142 = vmatpush1.msra.mxu0 0.0
    %143 = vmatprep.subr.mxu0 0.0
    %144 = vmatpush1.msra.mxu0 0.0
    %145 = vmatprep.subr.mxu0 0.0
    %146 = vmatpush1.msra.mxu0 0.0
    %147 = vmatprep.subr.mxu0 0.0
    %148 = vmatpush1.msra.mxu0 0.0
    %149 = vmatprep.subr.mxu0 0.0
    %150 = vmatpush1.msra.mxu0 0.0
    %151 = vmatprep.subr.mxu0 0.0
    %152 = vmatpush1.msra.mxu0 0.0
    %153 = vmatprep.subr.mxu0 0.0
    %154 = vmatpush1.msra.mxu0 0.0
    %155 = vmatprep.subr.mxu0 0.0
    %156 = vmatpush1.msra.mxu0 0.0
    %157 = vmatprep.subr.mxu0 0.0
    %158 = vmatpush1.msra.mxu0 0.0
    %159 = vmatprep.subr.mxu0 0.0
    %160 = vmatpush1.msra.mxu0 0.0
    %161 = vmatprep.subr.mxu0 0.0
    %162 = vmatpush1.msra.mxu0 0.0
    %163 = vmatprep.subr.mxu0 0.0
    %164 = vmatpush1.msra.mxu0 0.0
    %165 = vmatprep.subr.mxu0 0.0
    %166 = vmatpush1.msra.mxu0 0.0
    %167 = vmatprep.subr.mxu0 0.0
    %168 = vmatpush1.msra.mxu0 0.0
    %169 = vmatprep.subr.mxu0 0.0
    %170 = vmatpush1.msra.mxu0 0.0
    %171 = vmatprep.subr.mxu0 0.0
    %172 = vmatpush1.msra.mxu0 0.0
    %173 = vmatprep.subr.mxu0 0.0
    %174 = vmatpush1.msra.mxu0 0.0
    %175 = vmatprep.subr.mxu0 0.0
    %176 = vmatpush1.msra.mxu0 0.0
    %177 = vmatprep.subr.mxu0 0.0
    %178 = vmatpush1.msra.mxu0 0.0
    %179 = vmatprep.subr.mxu0 0.0
    %180 = vmatpush1.msra.mxu0 0.0
    %181 = vmatprep.subr.mxu0 0.0
    %182 = vmatpush1.msra.mxu0 0.0
    %183 = vmatprep.mubr.f32.mxu0 0.0
    %184 = vmatmul.mubr.f32.gmra.mrb[0].mxu0 %v114
    %v185 = vpop.f32.mrb[0].mxu0
    %v186 = vadd.f32 %v110, %v185
    %v187 = vpop.f32.mrb[0].mxu0
    %188 = vmatprep.mubr.f32.mxu0 0.0
    %189 = vmatmul.mubr.f32.gmra.mrb[0].mxu0 %v117
    %v190 = vpop.f32.mrb[0].mxu0
    %v191 = vadd.f32 %v110, %v190
    %v192 = vpop.f32.mrb[0].mxu0
    %193 = vdwg.mxu0
    %194 = vst [vmem:[#allocation2] sm:$0xff] %v186
    %195 = vst [vmem:[#allocation2 + $0x8] sm:$0xff] %v191
    %s196 = scalar_lea.vmem %s0, 16
    %v197 = vld [vmem:[%s196] sm:$0xff]
    %v198 = vld [vmem:[%s196 + $0x8] sm:$0xff]
    %s199 = scalar_lea.vmem %s1, 16
    %v200 = vld [vmem:[%s199] sm:$0xff]
    %v201 = vld [vmem:[%s199 + $0x8] sm:$0xff]
    %v203 = vsel %vm24, %v197, 0
    %v206 = vsel %vm24, %v198, 0
    %208 = vmatprep.subr.mxu0 0.0
    %209 = vmatpush1.msra.mxu0 %v200
    %210 = vmatprep.subr.mxu0 0.0
    %211 = vmatpush1.msra.mxu0 %v201
    %212 = vmatprep.subr.mxu0 0.0
    %213 = vmatpush1.msra.mxu0 0.0
    %214 = vmatprep.subr.mxu0 0.0
    %215 = vmatpush1.msra.mxu0 0.0
    %216 = vmatprep.subr.mxu0 0.0
    %217 = vmatpush1.msra.mxu0 0.0
    %218 = vmatprep.subr.mxu0 0.0
    %219 = vmatpush1.msra.mxu0 0.0
    %220 = vmatprep.subr.mxu0 0.0
    %221 = vmatpush1.msra.mxu0 0.0
    %222 = vmatprep.subr.mxu0 0.0
    %223 = vmatpush1.msra.mxu0 0.0
    %224 = vmatprep.subr.mxu0 0.0
    %225 = vmatpush1.msra.mxu0 0.0
    %226 = vmatprep.subr.mxu0 0.0
    %227 = vmatpush1.msra.mxu0 0.0
    %228 = vmatprep.subr.mxu0 0.0
    %229 = vmatpush1.msra.mxu0 0.0
    %230 = vmatprep.subr.mxu0 0.0
    %231 = vmatpush1.msra.mxu0 0.0
    %232 = vmatprep.subr.mxu0 0.0
    %233 = vmatpush1.msra.mxu0 0.0
    %234 = vmatprep.subr.mxu0 0.0
    %235 = vmatpush1.msra.mxu0 0.0
    %236 = vmatprep.subr.mxu0 0.0
    %237 = vmatpush1.msra.mxu0 0.0
    %238 = vmatprep.subr.mxu0 0.0
    %239 = vmatpush1.msra.mxu0 0.0
    %240 = vmatprep.subr.mxu0 0.0
    %241 = vmatpush1.msra.mxu0 0.0
    %242 = vmatprep.subr.mxu0 0.0
    %243 = vmatpush1.msra.mxu0 0.0
    %244 = vmatprep.subr.mxu0 0.0
    %245 = vmatpush1.msra.mxu0 0.0
    %246 = vmatprep.subr.mxu0 0.0
    %247 = vmatpush1.msra.mxu0 0.0
    %248 = vmatprep.subr.mxu0 0.0
    %249 = vmatpush1.msra.mxu0 0.0
    %250 = vmatprep.subr.mxu0 0.0
    %251 = vmatpush1.msra.mxu0 0.0
    %252 = vmatprep.subr.mxu0 0.0
    %253 = vmatpush1.msra.mxu0 0.0
    %254 = vmatprep.subr.mxu0 0.0
    %255 = vmatpush1.msra.mxu0 0.0
    %256 = vmatprep.subr.mxu0 0.0
    %257 = vmatpush1.msra.mxu0 0.0
    %258 = vmatprep.subr.mxu0 0.0
    %259 = vmatpush1.msra.mxu0 0.0
    %260 = vmatprep.subr.mxu0 0.0
    %261 = vmatpush1.msra.mxu0 0.0
    %262 = vmatprep.subr.mxu0 0.0
    %263 = vmatpush1.msra.mxu0 0.0
    %264 = vmatprep.subr.mxu0 0.0
    %265 = vmatpush1.msra.mxu0 0.0
    %266 = vmatprep.subr.mxu0 0.0
    %267 = vmatpush1.msra.mxu0 0.0
    %268 = vmatprep.subr.mxu0 0.0
    %269 = vmatpush1.msra.mxu0 0.0
    %270 = vmatprep.subr.mxu0 0.0
    %271 = vmatpush1.msra.mxu0 0.0
    %272 = vmatprep.mubr.f32.mxu0 0.0
    %273 = vmatmul.mubr.f32.gmra.mrb[0].mxu0 %v203
    %v274 = vpop.f32.mrb[0].mxu0
    %v275 = vadd.f32 0.0, %v274
    %v276 = vpop.f32.mrb[0].mxu0
    %277 = vmatprep.mubr.f32.mxu0 0.0
    %278 = vmatmul.mubr.f32.gmra.mrb[0].mxu0 %v206
    %v279 = vpop.f32.mrb[0].mxu0
    %v280 = vadd.f32 0.0, %v279
    %v281 = vpop.f32.mrb[0].mxu0
    %282 = vdwg.mxu0
    %v284 = vsel %vm112, %v275, 0
    %v287 = vsel %vm112, %v280, 0
    %289 = vmatprep.subr.mxu0 0.0
    %290 = vmatpush1.msra.mxu0 %v18
    %291 = vmatprep.subr.mxu0 0.0
    %292 = vmatpush1.msra.mxu0 0.0
    %293 = vmatprep.subr.mxu0 0.0
    %294 = vmatpush1.msra.mxu0 0.0
    %295 = vmatprep.subr.mxu0 0.0
    %296 = vmatpush1.msra.mxu0 0.0
    %297 = vmatprep.subr.mxu0 0.0
    %298 = vmatpush1.msra.mxu0 0.0
    %299 = vmatprep.subr.mxu0 0.0
    %300 = vmatpush1.msra.mxu0 0.0
    %301 = vmatprep.subr.mxu0 0.0
    %302 = vmatpush1.msra.mxu0 0.0
    %303 = vmatprep.subr.mxu0 0.0
    %304 = vmatpush1.msra.mxu0 0.0
    %305 = vmatprep.subr.mxu0 0.0
    %306 = vmatpush1.msra.mxu0 0.0
    %307 = vmatprep.subr.mxu0 0.0
    %308 = vmatpush1.msra.mxu0 0.0
    %309 = vmatprep.subr.mxu0 0.0
    %310 = vmatpush1.msra.mxu0 0.0
    %311 = vmatprep.subr.mxu0 0.0
    %312 = vmatpush1.msra.mxu0 0.0
    %313 = vmatprep.subr.mxu0 0.0
    %314 = vmatpush1.msra.mxu0 0.0
    %315 = vmatprep.subr.mxu0 0.0
    %316 = vmatpush1.msra.mxu0 0.0
    %317 = vmatprep.subr.mxu0 0.0
    %318 = vmatpush1.msra.mxu0 0.0
    %319 = vmatprep.subr.mxu0 0.0
    %320 = vmatpush1.msra.mxu0 0.0
    %321 = vmatprep.subr.mxu0 0.0
    %322 = vmatpush1.msra.mxu0 0.0
    %323 = vmatprep.subr.mxu0 0.0
    %324 = vmatpush1.msra.mxu0 0.0
    %325 = vmatprep.subr.mxu0 0.0
    %326 = vmatpush1.msra.mxu0 0.0
    %327 = vmatprep.subr.mxu0 0.0
    %328 = vmatpush1.msra.mxu0 0.0
    %329 = vmatprep.subr.mxu0 0.0
    %330 = vmatpush1.msra.mxu0 0.0
    %331 = vmatprep.subr.mxu0 0.0
    %332 = vmatpush1.msra.mxu0 0.0
    %333 = vmatprep.subr.mxu0 0.0
    %334 = vmatpush1.msra.mxu0 0.0
    %335 = vmatprep.subr.mxu0 0.0
    %336 = vmatpush1.msra.mxu0 0.0
    %337 = vmatprep.subr.mxu0 0.0
    %338 = vmatpush1.msra.mxu0 0.0
    %339 = vmatprep.subr.mxu0 0.0
    %340 = vmatpush1.msra.mxu0 0.0
    %341 = vmatprep.subr.mxu0 0.0
    %342 = vmatpush1.msra.mxu0 0.0
    %343 = vmatprep.subr.mxu0 0.0
    %344 = vmatpush1.msra.mxu0 0.0
    %345 = vmatprep.subr.mxu0 0.0
    %346 = vmatpush1.msra.mxu0 0.0
    %347 = vmatprep.subr.mxu0 0.0
    %348 = vmatpush1.msra.mxu0 0.0
    %349 = vmatprep.subr.mxu0 0.0
    %350 = vmatpush1.msra.mxu0 0.0
    %351 = vmatprep.subr.mxu0 0.0
    %352 = vmatpush1.msra.mxu0 0.0
    %353 = vmatprep.mubr.f32.mxu0 0.0
    %354 = vmatmul.mubr.f32.gmra.mrb[0].mxu0 %v284
    %v355 = vpop.f32.mrb[0].mxu0
    %v356 = vadd.f32 %v110, %v355
    %v357 = vpop.f32.mrb[0].mxu0
    %358 = vmatprep.mubr.f32.mxu0 0.0
    %359 = vmatmul.mubr.f32.gmra.mrb[0].mxu0 %v287
    %v360 = vpop.f32.mrb[0].mxu0
    %v361 = vadd.f32 %v110, %v360
    %v362 = vpop.f32.mrb[0].mxu0
    %363 = vdwg.mxu0
    %s364 = scalar_lea.vmem [#allocation2], 16
    %365 = vst [vmem:[%s364] sm:$0xff] %v356
    %366 = vst [vmem:[%s364 + $0x8] sm:$0xff] %v361
    // Predicated region
    $region18: #{tpu_custom_call.1} parent=1 // pred_check
      _
    $region19: #{tpu_custom_call.1} parent=1 // pred_check_branch
      %368 = sbr.rel (0) target = $region21
    $region20: #{tpu_custom_call.1} parent=1 // pred_region
      %s370 = ssub.s32 512, 512
      %371 = vsyncadd [#allocation3], %s370
      %s372 = sshll.u32 [#allocation2], 4
      %s373 = int_to_ptr.vmem [resolvable:$true] %s372
      %378 = dma.vmem_to_hbm [thread:$0]  %s373, 512, %s4, [#allocation3], 128, 128, 8
    $region21: #{tpu_custom_call.1} parent=1 // pred_fallthru
      _
    // Predicated region
    $region22: #{tpu_custom_call.1} parent=1 // pred_check
      _
    $region23: #{tpu_custom_call.1} parent=1 // pred_check_branch
      %380 = sbr.rel (0) target = $region25
    $region24: #{tpu_custom_call.1} parent=1 // pred_region
      %381 = dma.done [#allocation3], 512
    $region25: #{tpu_custom_call.1} parent=1 // pred_fallthru
      _
    %382 = vsyncpa [#allocation3], 1

</llo_original>
